<compile_context>
chip_gen: v7x
topology: tpu7x:2x2x1
jax: 0.10.0
libtpu: 0.0.40
codegen_flags: <defaults>
</compile_context>

<pallas_src>
import jax
import jax.numpy as jnp
from jax.experimental import pallas as pl
from jax.experimental.pallas import tpu as pltpu

IN_F = 512
HID_F = 256
OUT_F = 10
OUT_PAD = 128  # lane-dense padded output width


def _round_up(n, m):
    return ((n + m - 1) // m) * m


def _mlp_kernel(x_ref, w1t_ref, b1_ref, w2t_ref, b2_ref, o_ref):
    # x_ref:   (TB, 512)
    # w1t_ref: (512, 256)   b1_ref: (1, 256)
    # w2t_ref: (256, 128)   b2_ref: (1, 128)   (cols 10..127 are zero padding)
    # o_ref:   (TB, 128)
    x = x_ref[...]
    h = jnp.dot(x, w1t_ref[...], preferred_element_type=jnp.float32) + b1_ref[...]
    h = jnp.maximum(h, 0.0)  # ReLU
    o_ref[...] = (
        jnp.dot(h, w2t_ref[...], preferred_element_type=jnp.float32) + b2_ref[...]
    ).astype(o_ref.dtype)


def neural_network2_forward(x, w1, b1, w2, b2, *, block_b=1024):
    """Forward pass of NeuralNetwork2 as a single batch-tiled Pallas kernel.

    x:  (B, 512) f32
    w1: (256, 512), b1: (256,), w2: (10, 256), b2: (10,)   (PyTorch layout)
    returns logits: (B, 10) f32
    """
    B = x.shape[0]

    # --- wrapper-side layout plumbing (done once, outside the kernel) ---
    w1t = jnp.asarray(w1, jnp.float32).T  # (512, 256)
    b1_2d = jnp.asarray(b1, jnp.float32).reshape(1, HID_F)

    # Pad second layer to a lane-dense 128-wide output with zero columns.
    w2t = jnp.zeros((HID_F, OUT_PAD), jnp.float32).at[:, :OUT_F].set(
        jnp.asarray(w2, jnp.float32).T
    )
    b2_2d = jnp.zeros((1, OUT_PAD), jnp.float32).at[:, :OUT_F].set(
        jnp.asarray(b2, jnp.float32).reshape(1, OUT_F)
    )

    # --- batch tiling: tile rows of x, keep weights resident across the grid ---
    tb = min(block_b, _round_up(B, 8))  # sublane-aligned tile of rows
    b_pad = _round_up(B, tb)
    if b_pad != B:
        x = jnp.pad(x, ((0, b_pad - B), (0, 0)))
    grid = (b_pad // tb,)

    out = pl.pallas_call(
        _mlp_kernel,
        out_shape=jax.ShapeDtypeStruct((b_pad, OUT_PAD), jnp.float32),
        grid=grid,
        in_specs=[
            pl.BlockSpec((tb, IN_F), lambda i: (i, 0)),       # x tile (pipelined)
            pl.BlockSpec((IN_F, HID_F), lambda i: (0, 0)),    # w1t (resident)
            pl.BlockSpec((1, HID_F), lambda i: (0, 0)),       # b1  (resident)
            pl.BlockSpec((HID_F, OUT_PAD), lambda i: (0, 0)), # w2t (resident)
            pl.BlockSpec((1, OUT_PAD), lambda i: (0, 0)),     # b2  (resident)
        ],
        out_specs=pl.BlockSpec((tb, OUT_PAD), lambda i: (i, 0)),
        compiler_params=pltpu.CompilerParams(
            dimension_semantics=("parallel",),  # dual-TC on v7x
            vmem_limit_bytes=64 * 1024 * 1024,
        ),
    )(x, w1t, b1_2d, w2t, b2_2d)

    # Strip batch padding and the lane padding of the output dimension.
    return out[:B, :OUT_F]


def _init_params(key):
    """Deterministic init mimicking PyTorch nn.Linear default (uniform +-1/sqrt(fan_in))."""
    k1, k2, k3, k4 = jax.random.split(key, 4)
    bound1 = 1.0 / jnp.sqrt(jnp.float32(IN_F))
    bound2 = 1.0 / jnp.sqrt(jnp.float32(HID_F))
    w1 = jax.random.uniform(k1, (HID_F, IN_F), jnp.float32, -bound1, bound1)
    b1 = jax.random.uniform(k2, (HID_F,), jnp.float32, -bound1, bound1)
    w2 = jax.random.uniform(k3, (OUT_F, HID_F), jnp.float32, -bound2, bound2)
    b2 = jax.random.uniform(k4, (OUT_F,), jnp.float32, -bound2, bound2)
    return w1, b1, w2, b2


if __name__ == "__main__":
    key = jax.random.PRNGKey(0)
    kx, kp = jax.random.split(key)

    B = 8
    x = jax.random.normal(kx, (B, IN_F), dtype=jnp.float32)
    w1, b1, w2, b2 = _init_params(kp)

    logits = neural_network2_forward(x, w1, b1, w2, b2)
    logits = jax.block_until_ready(logits)

    # Pure-JAX reference check
    ref = jnp.maximum(x @ w1.T + b1, 0.0) @ w2.T + b2
    assert logits.shape == (B, OUT_F)
    assert jnp.allclose(logits, ref, atol=1e-4, rtol=1e-4)

    print("KERNEL_OK")
</pallas_src>

<mosaic_0001>
module attributes {stable_mosaic.version = 11 : i64} {
  func.func @_mlp_kernel(%arg0: i32, %arg1: memref<8x512xf32, #tpu.memory_space<vmem>>, %arg2: memref<512x256xf32, #tpu.memory_space<vmem>>, %arg3: memref<1x256xf32, #tpu.memory_space<vmem>>, %arg4: memref<256x128xf32, #tpu.memory_space<vmem>>, %arg5: memref<1x128xf32, #tpu.memory_space<vmem>>, %arg6: memref<8x128xf32, #tpu.memory_space<vmem>>) attributes {dimension_semantics = [#tpu.dimension_semantics<parallel>], iteration_bounds = array<i64: 1>, scalar_prefetch = 0 : i64, scratch_operands = 0 : i64, tpu.core_type = #tpu.core_type<tc>, window_params = [{transform_indices = @transform_0, window_bounds = array<i64: 8, 512>}, {pipeline_mode = #tpu.pipeline_mode<synchronous>, transform_indices = @transform_1, window_bounds = array<i64: 512, 256>}, {pipeline_mode = #tpu.pipeline_mode<synchronous>, transform_indices = @transform_2, window_bounds = array<i64: 1, 256>}, {pipeline_mode = #tpu.pipeline_mode<synchronous>, transform_indices = @transform_3, window_bounds = array<i64: 256, 128>}, {pipeline_mode = #tpu.pipeline_mode<synchronous>, transform_indices = @transform_4, window_bounds = array<i64: 1, 128>}, {transform_indices = @transform_5, window_bounds = array<i64: 8, 128>}]} {
    %c0 = arith.constant 0 : index
    %c0_0 = arith.constant 0 : index
    %0 = vector.load %arg1[%c0, %c0_0] : memref<8x512xf32, #tpu.memory_space<vmem>>, vector<8x512xf32>
    %c0_1 = arith.constant 0 : index
    %c0_2 = arith.constant 0 : index
    %1 = vector.load %arg2[%c0_1, %c0_2] : memref<512x256xf32, #tpu.memory_space<vmem>>, vector<512x256xf32>
    %cst = arith.constant dense<0.000000e+00> : vector<8x256xf32>
    %2 = tpu.matmul %0, %1, %cst {dimension_numbers = #tpu.dot_dimension_numbers<[1], [0], [0], [1], [0, 0, 1, 1], [], []>} : vector<8x512xf32>, vector<512x256xf32>, vector<8x256xf32> -> vector<8x256xf32>
    %c0_3 = arith.constant 0 : index
    %c0_4 = arith.constant 0 : index
    %3 = vector.load %arg3[%c0_3, %c0_4] : memref<1x256xf32, #tpu.memory_space<vmem>>, vector<1x256xf32>
    %4 = vector.broadcast %3 : vector<1x256xf32> to vector<8x256xf32>
    %5 = arith.addf %2, %4 : vector<8x256xf32>
    %cst_5 = arith.constant 0.000000e+00 : f32
    %6 = vector.broadcast %cst_5 : f32 to vector<8x256xf32>
    %7 = arith.maximumf %5, %6 : vector<8x256xf32>
    %c0_6 = arith.constant 0 : index
    %c0_7 = arith.constant 0 : index
    %8 = vector.load %arg4[%c0_6, %c0_7] : memref<256x128xf32, #tpu.memory_space<vmem>>, vector<256x128xf32>
    %cst_8 = arith.constant dense<0.000000e+00> : vector<8x128xf32>
    %9 = tpu.matmul %7, %8, %cst_8 {dimension_numbers = #tpu.dot_dimension_numbers<[1], [0], [0], [1], [0, 0, 1, 1], [], []>} : vector<8x256xf32>, vector<256x128xf32>, vector<8x128xf32> -> vector<8x128xf32>
    %c0_9 = arith.constant 0 : index
    %c0_10 = arith.constant 0 : index
    %10 = vector.load %arg5[%c0_9, %c0_10] : memref<1x128xf32, #tpu.memory_space<vmem>>, vector<1x128xf32>
    %11 = vector.broadcast %10 : vector<1x128xf32> to vector<8x128xf32>
    %12 = arith.addf %9, %11 : vector<8x128xf32>
    %c0_11 = arith.constant 0 : index
    %c0_12 = arith.constant 0 : index
    %13 = vector.load %arg6[%c0_11, %c0_12] : memref<8x128xf32, #tpu.memory_space<vmem>>, vector<8x128xf32>
    tpu.vector_store %arg6[%c0_11, %c0_12], %12 {strides = array<i32>} : memref<8x128xf32, #tpu.memory_space<vmem>>, vector<8x128xf32>,
    return
  }
  func.func @transform_0(%arg0: i32) -> (i32, i32) {
    %c0_i32 = arith.constant 0 : i32
    %c0_i32_0 = arith.constant 0 : i32
    return %arg0, %c0_i32 : i32, i32
  }
  func.func @transform_1(%arg0: i32) -> (i32, i32) {
    %c0_i32 = arith.constant 0 : i32
    %c0_i32_0 = arith.constant 0 : i32
    %c0_i32_1 = arith.constant 0 : i32
    return %c0_i32, %c0_i32_0 : i32, i32
  }
  func.func @transform_2(%arg0: i32) -> (i32, i32) {
    %c0_i32 = arith.constant 0 : i32
    %c0_i32_0 = arith.constant 0 : i32
    %c0_i32_1 = arith.constant 0 : i32
    return %c0_i32, %c0_i32_0 : i32, i32
  }
  func.func @transform_3(%arg0: i32) -> (i32, i32) {
    %c0_i32 = arith.constant 0 : i32
    %c0_i32_0 = arith.constant 0 : i32
    %c0_i32_1 = arith.constant 0 : i32
    return %c0_i32, %c0_i32_0 : i32, i32
  }
  func.func @transform_4(%arg0: i32) -> (i32, i32) {
    %c0_i32 = arith.constant 0 : i32
    %c0_i32_0 = arith.constant 0 : i32
    %c0_i32_1 = arith.constant 0 : i32
    return %c0_i32, %c0_i32_0 : i32, i32
  }
  func.func @transform_5(%arg0: i32) -> (i32, i32) {
    %c0_i32 = arith.constant 0 : i32
    %c0_i32_0 = arith.constant 0 : i32
    return %arg0, %c0_i32 : i32, i32
  }
}

</mosaic_0001>

<llo_original>
// kernel: tpu_custom_call.1
$region0: #{tpu_custom_call.1}
  #allocation0 [shape = 'u32[]', space=smem, size = 0x4, offset = 0x4, fixed_abs, tag = 'smem constant byte address 0x4 - core index']
  #allocation1 [shape = 'u32[144,128]{1,0:T(1,128)}', space=vmem, size = 0x12000, scoped, tag = 'internal scratch']
  %s0 = inlined_call_operand.hbm [shape: f32[8,512], index: 0, kind: input, shape index: {}]
  %s1 = inlined_call_operand.hbm [shape: f32[512,256], index: 1, kind: input, shape index: {}]
  %s2 = inlined_call_operand.hbm [shape: f32[1,256], index: 2, kind: input, shape index: {}]
  %s3 = inlined_call_operand.hbm [shape: f32[256,128], index: 3, kind: input, shape index: {}]
  %s4 = inlined_call_operand.hbm [shape: f32[1,128], index: 4, kind: input, shape index: {}]
  %s5 = inlined_call_operand.hbm [shape: f32[8,128], index: 5, kind: output, shape index: {}]
  %s6 = sld [smem:[#allocation0]]
  $region50: #{tpu_custom_call.1} parent=0
    _
  %s8 = ssub.s32 1, %s6
  %s9 = scalar_select 0, %s8, %s6
  $region1: #{tpu_custom_call.1} parent=0
    #allocation2 [shape = 'u8[16384]{0}', space=vmem, size = 0x4000, scoped, tag = 'input window, operand 0, single buffered']
    #allocation3 [shape = 's32[1]{0}', space=sflag, size = 0x4, scoped, tag = 'scoped memory for tpu_custom_call.1']
    #allocation4 [shape = 's32[1]{0}', space=sflag, size = 0x4, scoped, tag = 'scoped memory for tpu_custom_call.1']
    #allocation5 [shape = 'u8[524288]{0}', space=vmem, size = 0x80000, scoped, tag = 'input window, operand 1, single buffered']
    #allocation6 [shape = 's32[1]{0}', space=sflag, size = 0x4, scoped, tag = 'scoped memory for tpu_custom_call.1']
    #allocation7 [shape = 'u8[1024]{0}', space=vmem, size = 0x400, scoped, tag = 'input window, operand 2, single buffered']
    #allocation8 [shape = 'u8[131072]{0}', space=vmem, size = 0x20000, scoped, tag = 'input window, operand 3, single buffered']
    #allocation9 [shape = 's32[1]{0}', space=sflag, size = 0x4, scoped, tag = 'scoped memory for tpu_custom_call.1']
    #allocation10 [shape = 'u8[512]{0}', space=vmem, size = 0x400, scoped, tag = 'input window, operand 4, single buffered']
    #allocation11 [shape = 'u8[4096]{0}', space=vmem, size = 0x1000, scoped, tag = 'output window, operand 0, single buffered']
    %10 = vsyncpa [#allocation3], 0
    %11 = vsyncpa [#allocation6], 0
    %12 = vsyncpa [#allocation9], 0
    %13 = vsyncpa [#allocation4], 0
    // Predicated region
    $region2: #{tpu_custom_call.1} parent=1 // pred_check
      _
    $region3: #{tpu_custom_call.1} parent=1 // pred_check_branch
      %15 = sbr.rel (0) target = $region5
    $region4: #{tpu_custom_call.1} parent=1 // pred_region
      %s17 = ssub.s32 512, 512
      %18 = vsyncadd [#allocation3], %s17
      %s20 = sshll.u32 [#allocation2], 4
      %s21 = int_to_ptr.vmem [resolvable:$true] %s20
      %23 = dma.hbm_to_vmem [thread:$0]  %s0, 512, %s21, [#allocation3]
    $region5: #{tpu_custom_call.1} parent=1 // pred_fallthru
      _
    // Predicated region
    $region6: #{tpu_custom_call.1} parent=1 // pred_check
      _
    $region7: #{tpu_custom_call.1} parent=1 // pred_check_branch
      %25 = sbr.rel (0) target = $region9
    $region8: #{tpu_custom_call.1} parent=1 // pred_region
      %s27 = ssub.s32 16384, 16384
      %28 = vsyncadd [#allocation6], %s27
      %s29 = sshll.u32 [#allocation5], 4
      %s30 = int_to_ptr.vmem [resolvable:$true] %s29
      %35 = dma.hbm_to_vmem [thread:$0]  %s1, 16384, %s30, [#allocation6], 256, 256, 16
    $region9: #{tpu_custom_call.1} parent=1 // pred_fallthru
      _
    // Predicated region
    $region10: #{tpu_custom_call.1} parent=1 // pred_check
      _
    $region11: #{tpu_custom_call.1} parent=1 // pred_check_branch
      %37 = sbr.rel (0) target = $region13
    $region12: #{tpu_custom_call.1} parent=1 // pred_region
      %s39 = ssub.s32 32, 32
      %40 = vsyncadd [#allocation6], %s39
      %s42 = sshll.u32 [#allocation7], 4
      %s43 = int_to_ptr.vmem [resolvable:$true] %s42
      %45 = dma.hbm_to_vmem [thread:$0]  %s2, 32, %s43, [#allocation6]
    $region13: #{tpu_custom_call.1} parent=1 // pred_fallthru
      _
    // Predicated region
    $region14: #{tpu_custom_call.1} parent=1 // pred_check
      _
    $region15: #{tpu_custom_call.1} parent=1 // pred_check_branch
      %47 = sbr.rel (0) target = $region17
    $region16: #{tpu_custom_call.1} parent=1 // pred_region
      %s49 = ssub.s32 4096, 4096
      %50 = vsyncadd [#allocation9], %s49
      %s51 = sshll.u32 [#allocation8], 4
      %s52 = int_to_ptr.vmem [resolvable:$true] %s51
      %57 = dma.hbm_to_vmem [thread:$0]  %s3, 4096, %s52, [#allocation9], 128, 128, 8
    $region17: #{tpu_custom_call.1} parent=1 // pred_fallthru
      _
    // Predicated region
    $region18: #{tpu_custom_call.1} parent=1 // pred_check
      _
    $region19: #{tpu_custom_call.1} parent=1 // pred_check_branch
      %59 = sbr.rel (0) target = $region21
    $region20: #{tpu_custom_call.1} parent=1 // pred_region
      %s61 = ssub.s32 16, 16
      %62 = vsyncadd [#allocation9], %s61
      %s64 = sshll.u32 [#allocation10], 4
      %s65 = int_to_ptr.vmem [resolvable:$true] %s64
      %67 = dma.hbm_to_vmem [thread:$0]  %s4, 16, %s65, [#allocation9]
    $region21: #{tpu_custom_call.1} parent=1 // pred_fallthru
      _
    // Predicated region
    $region22: #{tpu_custom_call.1} parent=1 // pred_check
      _
    $region23: #{tpu_custom_call.1} parent=1 // pred_check_branch
      %69 = sbr.rel (0) target = $region25
    $region24: #{tpu_custom_call.1} parent=1 // pred_region
      %70 = dma.done [#allocation3], 512
    $region25: #{tpu_custom_call.1} parent=1 // pred_fallthru
      _
    // Predicated region
    $region26: #{tpu_custom_call.1} parent=1 // pred_check
      _
    $region27: #{tpu_custom_call.1} parent=1 // pred_check_branch
      %72 = sbr.rel (0) target = $region29
    $region28: #{tpu_custom_call.1} parent=1 // pred_region
      %73 = dma.done [#allocation6], 16384
    $region29: #{tpu_custom_call.1} parent=1 // pred_fallthru
      _
    // Predicated region
    $region30: #{tpu_custom_call.1} parent=1 // pred_check
      _
    $region31: #{tpu_custom_call.1} parent=1 // pred_check_branch
      %75 = sbr.rel (0) target = $region33
    $region32: #{tpu_custom_call.1} parent=1 // pred_region
      %76 = dma.done [#allocation6], 32
    $region33: #{tpu_custom_call.1} parent=1 // pred_fallthru
      _
    // Predicated region
    $region34: #{tpu_custom_call.1} parent=1 // pred_check
      _
    $region35: #{tpu_custom_call.1} parent=1 // pred_check_branch
      %78 = sbr.rel (0) target = $region37
    $region36: #{tpu_custom_call.1} parent=1 // pred_region
      %79 = dma.done [#allocation9], 4096
    $region37: #{tpu_custom_call.1} parent=1 // pred_fallthru
      _
    // Predicated region
    $region38: #{tpu_custom_call.1} parent=1 // pred_check
      _
    $region39: #{tpu_custom_call.1} parent=1 // pred_check_branch
      %81 = sbr.rel (0) target = $region41
    $region40: #{tpu_custom_call.1} parent=1 // pred_region
      %82 = dma.done [#allocation9], 16
    $region41: #{tpu_custom_call.1} parent=1 // pred_fallthru
      _
    %v83 = vld [vmem:[#allocation2] sm:$0xff]
    %v84 = vld [vmem:[#allocation2 + $0x8] sm:$0xff]
    %v85 = vld [vmem:[#allocation2 + $0x10] sm:$0xff]
    %v86 = vld [vmem:[#allocation2 + $0x18] sm:$0xff]
    %v87 = vld [vmem:[#allocation5] sm:$0xff]
    %v88 = vld [vmem:[#allocation5 + $0x8] sm:$0xff]
    %v89 = vld [vmem:[#allocation5 + $0x10] sm:$0xff]
    %v90 = vld [vmem:[#allocation5 + $0x18] sm:$0xff]
    %v91 = vld [vmem:[#allocation5 + $0x20] sm:$0xff]
    %v92 = vld [vmem:[#allocation5 + $0x28] sm:$0xff]
    %v93 = vld [vmem:[#allocation5 + $0x30] sm:$0xff]
    %v94 = vld [vmem:[#allocation5 + $0x38] sm:$0xff]
    %v95 = vld [vmem:[#allocation5 + $0x40] sm:$0xff]
    %v96 = vld [vmem:[#allocation5 + $0x48] sm:$0xff]
    %v97 = vld [vmem:[#allocation5 + $0x50] sm:$0xff]
    %v98 = vld [vmem:[#allocation5 + $0x58] sm:$0xff]
    %v99 = vld [vmem:[#allocation5 + $0x60] sm:$0xff]
    %v100 = vld [vmem:[#allocation5 + $0x68] sm:$0xff]
    %v101 = vld [vmem:[#allocation5 + $0x70] sm:$0xff]
    %v102 = vld [vmem:[#allocation5 + $0x78] sm:$0xff]
    %v103 = vld [vmem:[#allocation5 + $0x80] sm:$0xff]
    %v104 = vld [vmem:[#allocation5 + $0x88] sm:$0xff]
    %v105 = vld [vmem:[#allocation5 + $0x90] sm:$0xff]
    %v106 = vld [vmem:[#allocation5 + $0x98] sm:$0xff]
    %v107 = vld [vmem:[#allocation5 + $0xa0] sm:$0xff]
    %v108 = vld [vmem:[#allocation5 + $0xa8] sm:$0xff]
    %v109 = vld [vmem:[#allocation5 + $0xb0] sm:$0xff]
    %v110 = vld [vmem:[#allocation5 + $0xb8] sm:$0xff]
    %v111 = vld [vmem:[#allocation5 + $0xc0] sm:$0xff]
    %v112 = vld [vmem:[#allocation5 + $0xc8] sm:$0xff]
    %v113 = vld [vmem:[#allocation5 + $0xd0] sm:$0xff]
    %v114 = vld [vmem:[#allocation5 + $0xd8] sm:$0xff]
    %v115 = vld [vmem:[#allocation5 + $0xe0] sm:$0xff]
    %v116 = vld [vmem:[#allocation5 + $0xe8] sm:$0xff]
    %v117 = vld [vmem:[#allocation5 + $0xf0] sm:$0xff]
    %v118 = vld [vmem:[#allocation5 + $0xf8] sm:$0xff]
    %v119 = vld [vmem:[#allocation5 + $0x100] sm:$0xff]
    %v120 = vld [vmem:[#allocation5 + $0x108] sm:$0xff]
    %v121 = vld [vmem:[#allocation5 + $0x110] sm:$0xff]
    %v122 = vld [vmem:[#allocation5 + $0x118] sm:$0xff]
    %v123 = vld [vmem:[#allocation5 + $0x120] sm:$0xff]
    %v124 = vld [vmem:[#allocation5 + $0x128] sm:$0xff]
    %v125 = vld [vmem:[#allocation5 + $0x130] sm:$0xff]
    %v126 = vld [vmem:[#allocation5 + $0x138] sm:$0xff]
    %v127 = vld [vmem:[#allocation5 + $0x140] sm:$0xff]
    %v128 = vld [vmem:[#allocation5 + $0x148] sm:$0xff]
    %v129 = vld [vmem:[#allocation5 + $0x150] sm:$0xff]
    %v130 = vld [vmem:[#allocation5 + $0x158] sm:$0xff]
    %v131 = vld [vmem:[#allocation5 + $0x160] sm:$0xff]
    %v132 = vld [vmem:[#allocation5 + $0x168] sm:$0xff]
    %v133 = vld [vmem:[#allocation5 + $0x170] sm:$0xff]
    %v134 = vld [vmem:[#allocation5 + $0x178] sm:$0xff]
    %v135 = vld [vmem:[#allocation5 + $0x180] sm:$0xff]
    %v136 = vld [vmem:[#allocation5 + $0x188] sm:$0xff]
    %v137 = vld [vmem:[#allocation5 + $0x190] sm:$0xff]
    %v138 = vld [vmem:[#allocation5 + $0x198] sm:$0xff]
    %v139 = vld [vmem:[#allocation5 + $0x1a0] sm:$0xff]
    %v140 = vld [vmem:[#allocation5 + $0x1a8] sm:$0xff]
    %v141 = vld [vmem:[#allocation5 + $0x1b0] sm:$0xff]
    %v142 = vld [vmem:[#allocation5 + $0x1b8] sm:$0xff]
    %v143 = vld [vmem:[#allocation5 + $0x1c0] sm:$0xff]
    %v144 = vld [vmem:[#allocation5 + $0x1c8] sm:$0xff]
    %v145 = vld [vmem:[#allocation5 + $0x1d0] sm:$0xff]
    %v146 = vld [vmem:[#allocation5 + $0x1d8] sm:$0xff]
    %v147 = vld [vmem:[#allocation5 + $0x1e0] sm:$0xff]
    %v148 = vld [vmem:[#allocation5 + $0x1e8] sm:$0xff]
    %v149 = vld [vmem:[#allocation5 + $0x1f0] sm:$0xff]
    %v150 = vld [vmem:[#allocation5 + $0x1f8] sm:$0xff]
    %v151 = vld [vmem:[#allocation5 + $0x200] sm:$0xff]
    %v152 = vld [vmem:[#allocation5 + $0x208] sm:$0xff]
    %v153 = vld [vmem:[#allocation5 + $0x210] sm:$0xff]
    %v154 = vld [vmem:[#allocation5 + $0x218] sm:$0xff]
    %v155 = vld [vmem:[#allocation5 + $0x220] sm:$0xff]
    %v156 = vld [vmem:[#allocation5 + $0x228] sm:$0xff]
    %v157 = vld [vmem:[#allocation5 + $0x230] sm:$0xff]
    %v158 = vld [vmem:[#allocation5 + $0x238] sm:$0xff]
    %v159 = vld [vmem:[#allocation5 + $0x240] sm:$0xff]
    %v160 = vld [vmem:[#allocation5 + $0x248] sm:$0xff]
    %v161 = vld [vmem:[#allocation5 + $0x250] sm:$0xff]
    %v162 = vld [vmem:[#allocation5 + $0x258] sm:$0xff]
    %v163 = vld [vmem:[#allocation5 + $0x260] sm:$0xff]
    %v164 = vld [vmem:[#allocation5 + $0x268] sm:$0xff]
    %v165 = vld [vmem:[#allocation5 + $0x270] sm:$0xff]
    %v166 = vld [vmem:[#allocation5 + $0x278] sm:$0xff]
    %v167 = vld [vmem:[#allocation5 + $0x280] sm:$0xff]
    %v168 = vld [vmem:[#allocation5 + $0x288] sm:$0xff]
    %v169 = vld [vmem:[#allocation5 + $0x290] sm:$0xff]
    %v170 = vld [vmem:[#allocation5 + $0x298] sm:$0xff]
    %v171 = vld [vmem:[#allocation5 + $0x2a0] sm:$0xff]
    %v172 = vld [vmem:[#allocation5 + $0x2a8] sm:$0xff]
    %v173 = vld [vmem:[#allocation5 + $0x2b0] sm:$0xff]
    %v174 = vld [vmem:[#allocation5 + $0x2b8] sm:$0xff]
    %v175 = vld [vmem:[#allocation5 + $0x2c0] sm:$0xff]
    %v176 = vld [vmem:[#allocation5 + $0x2c8] sm:$0xff]
    %v177 = vld [vmem:[#allocation5 + $0x2d0] sm:$0xff]
    %v178 = vld [vmem:[#allocation5 + $0x2d8] sm:$0xff]
    %v179 = vld [vmem:[#allocation5 + $0x2e0] sm:$0xff]
    %v180 = vld [vmem:[#allocation5 + $0x2e8] sm:$0xff]
    %v181 = vld [vmem:[#allocation5 + $0x2f0] sm:$0xff]
    %v182 = vld [vmem:[#allocation5 + $0x2f8] sm:$0xff]
    %v183 = vld [vmem:[#allocation5 + $0x300] sm:$0xff]
    %v184 = vld [vmem:[#allocation5 + $0x308] sm:$0xff]
    %v185 = vld [vmem:[#allocation5 + $0x310] sm:$0xff]
    %v186 = vld [vmem:[#allocation5 + $0x318] sm:$0xff]
    %v187 = vld [vmem:[#allocation5 + $0x320] sm:$0xff]
    %v188 = vld [vmem:[#allocation5 + $0x328] sm:$0xff]
    %v189 = vld [vmem:[#allocation5 + $0x330] sm:$0xff]
    %v190 = vld [vmem:[#allocation5 + $0x338] sm:$0xff]
    %v191 = vld [vmem:[#allocation5 + $0x340] sm:$0xff]
    %v192 = vld [vmem:[#allocation5 + $0x348] sm:$0xff]
    %v193 = vld [vmem:[#allocation5 + $0x350] sm:$0xff]
    %v194 = vld [vmem:[#allocation5 + $0x358] sm:$0xff]
    %v195 = vld [vmem:[#allocation5 + $0x360] sm:$0xff]
    %v196 = vld [vmem:[#allocation5 + $0x368] sm:$0xff]
    %v197 = vld [vmem:[#allocation5 + $0x370] sm:$0xff]
    %v198 = vld [vmem:[#allocation5 + $0x378] sm:$0xff]
    %v199 = vld [vmem:[#allocation5 + $0x380] sm:$0xff]
    %v200 = vld [vmem:[#allocation5 + $0x388] sm:$0xff]
    %v201 = vld [vmem:[#allocation5 + $0x390] sm:$0xff]
    %v202 = vld [vmem:[#allocation5 + $0x398] sm:$0xff]
    %v203 = vld [vmem:[#allocation5 + $0x3a0] sm:$0xff]
    %v204 = vld [vmem:[#allocation5 + $0x3a8] sm:$0xff]
    %v205 = vld [vmem:[#allocation5 + $0x3b0] sm:$0xff]
    %v206 = vld [vmem:[#allocation5 + $0x3b8] sm:$0xff]
    %v207 = vld [vmem:[#allocation5 + $0x3c0] sm:$0xff]
    %v208 = vld [vmem:[#allocation5 + $0x3c8] sm:$0xff]
    %v209 = vld [vmem:[#allocation5 + $0x3d0] sm:$0xff]
    %v210 = vld [vmem:[#allocation5 + $0x3d8] sm:$0xff]
    %v211 = vld [vmem:[#allocation5 + $0x3e0] sm:$0xff]
    %v212 = vld [vmem:[#allocation5 + $0x3e8] sm:$0xff]
    %v213 = vld [vmem:[#allocation5 + $0x3f0] sm:$0xff]
    %v214 = vld [vmem:[#allocation5 + $0x3f8] sm:$0xff]
    %v215 = vld [vmem:[#allocation7] sm:$0x3]
    %v217 = vlaneseq
    %v218 = vshrl.u32 %v217, 7
    %v219 = vsub.s32 0, %v218
    %v220 = vrot.slane %v215, %v219
    %v221 = vlaneseq
    %v222 = vshrl.u32 %v221, 7
    %v223 = vsub.s32 1, %v222
    %v224 = vrot.slane %v215, %v223
    %227 = vmatprep.subr.mxu0 %v88
    %228 = vmatpush1.msra.mxu0 %v87
    %229 = vmatprep.subr.mxu0 %v90
    %230 = vmatpush1.msra.mxu0 %v89
    %231 = vmatprep.subr.mxu0 %v92
    %232 = vmatpush1.msra.mxu0 %v91
    %233 = vmatprep.subr.mxu0 %v94
    %234 = vmatpush1.msra.mxu0 %v93
    %235 = vmatprep.subr.mxu0 %v96
    %236 = vmatpush1.msra.mxu0 %v95
    %237 = vmatprep.subr.mxu0 %v98
    %238 = vmatpush1.msra.mxu0 %v97
    %239 = vmatprep.subr.mxu0 %v100
    %240 = vmatpush1.msra.mxu0 %v99
    %241 = vmatprep.subr.mxu0 %v102
    %242 = vmatpush1.msra.mxu0 %v101
    %243 = vmatprep.subr.mxu0 %v104
    %244 = vmatpush1.msra.mxu0 %v103
    %245 = vmatprep.subr.mxu0 %v106
    %246 = vmatpush1.msra.mxu0 %v105
    %247 = vmatprep.subr.mxu0 %v108
    %248 = vmatpush1.msra.mxu0 %v107
    %249 = vmatprep.subr.mxu0 %v110
    %250 = vmatpush1.msra.mxu0 %v109
    %251 = vmatprep.subr.mxu0 %v112
    %252 = vmatpush1.msra.mxu0 %v111
    %253 = vmatprep.subr.mxu0 %v114
    %254 = vmatpush1.msra.mxu0 %v113
    %255 = vmatprep.subr.mxu0 %v116
    %256 = vmatpush1.msra.mxu0 %v115
    %257 = vmatprep.subr.mxu0 %v118
    %258 = vmatpush1.msra.mxu0 %v117
    %259 = vmatprep.subr.mxu0 %v120
    %260 = vmatpush1.msra.mxu0 %v119
    %261 = vmatprep.subr.mxu0 %v122
    %262 = vmatpush1.msra.mxu0 %v121
    %263 = vmatprep.subr.mxu0 %v124
    %264 = vmatpush1.msra.mxu0 %v123
    %265 = vmatprep.subr.mxu0 %v126
    %266 = vmatpush1.msra.mxu0 %v125
    %267 = vmatprep.subr.mxu0 %v128
    %268 = vmatpush1.msra.mxu0 %v127
    %269 = vmatprep.subr.mxu0 %v130
    %270 = vmatpush1.msra.mxu0 %v129
    %271 = vmatprep.subr.mxu0 %v132
    %272 = vmatpush1.msra.mxu0 %v131
    %273 = vmatprep.subr.mxu0 %v134
    %274 = vmatpush1.msra.mxu0 %v133
    %275 = vmatprep.subr.mxu0 %v136
    %276 = vmatpush1.msra.mxu0 %v135
    %277 = vmatprep.subr.mxu0 %v138
    %278 = vmatpush1.msra.mxu0 %v137
    %279 = vmatprep.subr.mxu0 %v140
    %280 = vmatpush1.msra.mxu0 %v139
    %281 = vmatprep.subr.mxu0 %v142
    %282 = vmatpush1.msra.mxu0 %v141
    %283 = vmatprep.subr.mxu0 %v144
    %284 = vmatpush1.msra.mxu0 %v143
    %285 = vmatprep.subr.mxu0 %v146
    %286 = vmatpush1.msra.mxu0 %v145
    %287 = vmatprep.subr.mxu0 %v148
    %288 = vmatpush1.msra.mxu0 %v147
    %289 = vmatprep.subr.mxu0 %v150
    %290 = vmatpush1.msra.mxu0 %v149
    %291 = vmatprep.mubr.f32.mxu0 %v84
    %292 = vmatmul.mubr.f32.gmra.mrb[0].mxu0 %v83
    %v293 = vpop.f32.mrb[0].mxu0
    %v294 = vadd.f32 %v220, %v293
    %v295 = vpop.f32.mrb[0].mxu0
    %v296 = vadd.f32 %v224, %v295
    %297 = vdwg.mxu0
    %298 = vmatprep.subr.mxu0 %v152
    %299 = vmatpush1.msra.mxu0 %v151
    %300 = vmatprep.subr.mxu0 %v154
    %301 = vmatpush1.msra.mxu0 %v153
    %302 = vmatprep.subr.mxu0 %v156
    %303 = vmatpush1.msra.mxu0 %v155
    %304 = vmatprep.subr.mxu0 %v158
    %305 = vmatpush1.msra.mxu0 %v157
    %306 = vmatprep.subr.mxu0 %v160
    %307 = vmatpush1.msra.mxu0 %v159
    %308 = vmatprep.subr.mxu0 %v162
    %309 = vmatpush1.msra.mxu0 %v161
    %310 = vmatprep.subr.mxu0 %v164
    %311 = vmatpush1.msra.mxu0 %v163
    %312 = vmatprep.subr.mxu0 %v166
    %313 = vmatpush1.msra.mxu0 %v165
    %314 = vmatprep.subr.mxu0 %v168
    %315 = vmatpush1.msra.mxu0 %v167
    %316 = vmatprep.subr.mxu0 %v170
    %317 = vmatpush1.msra.mxu0 %v169
    %318 = vmatprep.subr.mxu0 %v172
    %319 = vmatpush1.msra.mxu0 %v171
    %320 = vmatprep.subr.mxu0 %v174
    %321 = vmatpush1.msra.mxu0 %v173
    %322 = vmatprep.subr.mxu0 %v176
    %323 = vmatpush1.msra.mxu0 %v175
    %324 = vmatprep.subr.mxu0 %v178
    %325 = vmatpush1.msra.mxu0 %v177
    %326 = vmatprep.subr.mxu0 %v180
    %327 = vmatpush1.msra.mxu0 %v179
    %328 = vmatprep.subr.mxu0 %v182
    %329 = vmatpush1.msra.mxu0 %v181
    %330 = vmatprep.subr.mxu0 %v184
    %331 = vmatpush1.msra.mxu0 %v183
    %332 = vmatprep.subr.mxu0 %v186
    %333 = vmatpush1.msra.mxu0 %v185
    %334 = vmatprep.subr.mxu0 %v188
    %335 = vmatpush1.msra.mxu0 %v187
    %336 = vmatprep.subr.mxu0 %v190
    %337 = vmatpush1.msra.mxu0 %v189
    %338 = vmatprep.subr.mxu0 %v192
    %339 = vmatpush1.msra.mxu0 %v191
    %340 = vmatprep.subr.mxu0 %v194
    %341 = vmatpush1.msra.mxu0 %v193
    %342 = vmatprep.subr.mxu0 %v196
    %343 = vmatpush1.msra.mxu0 %v195
    %344 = vmatprep.subr.mxu0 %v198
    %345 = vmatpush1.msra.mxu0 %v197
    %346 = vmatprep.subr.mxu0 %v200
    %347 = vmatpush1.msra.mxu0 %v199
    %348 = vmatprep.subr.mxu0 %v202
    %349 = vmatpush1.msra.mxu0 %v201
    %350 = vmatprep.subr.mxu0 %v204
    %351 = vmatpush1.msra.mxu0 %v203
    %352 = vmatprep.subr.mxu0 %v206
    %353 = vmatpush1.msra.mxu0 %v205
    %354 = vmatprep.subr.mxu0 %v208
    %355 = vmatpush1.msra.mxu0 %v207
    %356 = vmatprep.subr.mxu0 %v210
    %357 = vmatpush1.msra.mxu0 %v209
    %358 = vmatprep.subr.mxu0 %v212
    %359 = vmatpush1.msra.mxu0 %v211
    %360 = vmatprep.subr.mxu0 %v214
    %361 = vmatpush1.msra.mxu0 %v213
    %362 = vmatprep.mubr.f32.mxu0 %v86
    %363 = vmatmul.mubr.f32.gmra.mrb[0].mxu0 %v85
    %v364 = vpop.f32.mrb[0].mxu0
    %v365 = vadd.f32 %v294, %v364
    %v366 = vpop.f32.mrb[0].mxu0
    %v367 = vadd.f32 %v296, %v366
    %368 = vdwg.mxu0
    %v369 = vmax.f32 %v365, 0.0
    %v370 = vmax.f32 %v367, 0.0
    %v371 = vld [vmem:[#allocation8] sm:$0xff]
    %v372 = vld [vmem:[#allocation8 + $0x8] sm:$0xff]
    %v373 = vld [vmem:[#allocation8 + $0x10] sm:$0xff]
    %v374 = vld [vmem:[#allocation8 + $0x18] sm:$0xff]
    %v375 = vld [vmem:[#allocation8 + $0x20] sm:$0xff]
    %v376 = vld [vmem:[#allocation8 + $0x28] sm:$0xff]
    %v377 = vld [vmem:[#allocation8 + $0x30] sm:$0xff]
    %v378 = vld [vmem:[#allocation8 + $0x38] sm:$0xff]
    %v379 = vld [vmem:[#allocation8 + $0x40] sm:$0xff]
    %v380 = vld [vmem:[#allocation8 + $0x48] sm:$0xff]
    %v381 = vld [vmem:[#allocation8 + $0x50] sm:$0xff]
    %v382 = vld [vmem:[#allocation8 + $0x58] sm:$0xff]
    %v383 = vld [vmem:[#allocation8 + $0x60] sm:$0xff]
    %v384 = vld [vmem:[#allocation8 + $0x68] sm:$0xff]
    %v385 = vld [vmem:[#allocation8 + $0x70] sm:$0xff]
    %v386 = vld [vmem:[#allocation8 + $0x78] sm:$0xff]
    %v387 = vld [vmem:[#allocation8 + $0x80] sm:$0xff]
    %v388 = vld [vmem:[#allocation8 + $0x88] sm:$0xff]
    %v389 = vld [vmem:[#allocation8 + $0x90] sm:$0xff]
    %v390 = vld [vmem:[#allocation8 + $0x98] sm:$0xff]
    %v391 = vld [vmem:[#allocation8 + $0xa0] sm:$0xff]
    %v392 = vld [vmem:[#allocation8 + $0xa8] sm:$0xff]
    %v393 = vld [vmem:[#allocation8 + $0xb0] sm:$0xff]
    %v394 = vld [vmem:[#allocation8 + $0xb8] sm:$0xff]
    %v395 = vld [vmem:[#allocation8 + $0xc0] sm:$0xff]
    %v396 = vld [vmem:[#allocation8 + $0xc8] sm:$0xff]
    %v397 = vld [vmem:[#allocation8 + $0xd0] sm:$0xff]
    %v398 = vld [vmem:[#allocation8 + $0xd8] sm:$0xff]
    %v399 = vld [vmem:[#allocation8 + $0xe0] sm:$0xff]
    %v400 = vld [vmem:[#allocation8 + $0xe8] sm:$0xff]
    %v401 = vld [vmem:[#allocation8 + $0xf0] sm:$0xff]
    %v402 = vld [vmem:[#allocation8 + $0xf8] sm:$0xff]
    %v403 = vld [vmem:[#allocation10] sm:$0x1]
    %v405 = vlaneseq
    %v406 = vshrl.u32 %v405, 7
    %v407 = vsub.s32 0, %v406
    %v408 = vrot.slane %v403, %v407
    %410 = vmatprep.subr.mxu0 0.0
    %411 = vmatpush1.msra.mxu0 %v371
    %412 = vmatprep.subr.mxu0 0.0
    %413 = vmatpush1.msra.mxu0 %v372
    %414 = vmatprep.subr.mxu0 0.0
    %415 = vmatpush1.msra.mxu0 %v373
    %416 = vmatprep.subr.mxu0 0.0
    %417 = vmatpush1.msra.mxu0 %v374
    %418 = vmatprep.subr.mxu0 0.0
    %419 = vmatpush1.msra.mxu0 %v375
    %420 = vmatprep.subr.mxu0 0.0
    %421 = vmatpush1.msra.mxu0 %v376
    %422 = vmatprep.subr.mxu0 0.0
    %423 = vmatpush1.msra.mxu0 %v377
    %424 = vmatprep.subr.mxu0 0.0
    %425 = vmatpush1.msra.mxu0 %v378
    %426 = vmatprep.subr.mxu0 0.0
    %427 = vmatpush1.msra.mxu0 %v379
    %428 = vmatprep.subr.mxu0 0.0
    %429 = vmatpush1.msra.mxu0 %v380
    %430 = vmatprep.subr.mxu0 0.0
    %431 = vmatpush1.msra.mxu0 %v381
    %432 = vmatprep.subr.mxu0 0.0
    %433 = vmatpush1.msra.mxu0 %v382
    %434 = vmatprep.subr.mxu0 0.0
    %435 = vmatpush1.msra.mxu0 %v383
    %436 = vmatprep.subr.mxu0 0.0
    %437 = vmatpush1.msra.mxu0 %v384
    %438 = vmatprep.subr.mxu0 0.0
    %439 = vmatpush1.msra.mxu0 %v385
    %440 = vmatprep.subr.mxu0 0.0
    %441 = vmatpush1.msra.mxu0 %v386
    %442 = vmatprep.subr.mxu0 0.0
    %443 = vmatpush1.msra.mxu0 %v387
    %444 = vmatprep.subr.mxu0 0.0
    %445 = vmatpush1.msra.mxu0 %v388
    %446 = vmatprep.subr.mxu0 0.0
    %447 = vmatpush1.msra.mxu0 %v389
    %448 = vmatprep.subr.mxu0 0.0
    %449 = vmatpush1.msra.mxu0 %v390
    %450 = vmatprep.subr.mxu0 0.0
    %451 = vmatpush1.msra.mxu0 %v391
    %452 = vmatprep.subr.mxu0 0.0
    %453 = vmatpush1.msra.mxu0 %v392
    %454 = vmatprep.subr.mxu0 0.0
    %455 = vmatpush1.msra.mxu0 %v393
    %456 = vmatprep.subr.mxu0 0.0
    %457 = vmatpush1.msra.mxu0 %v394
    %458 = vmatprep.subr.mxu0 0.0
    %459 = vmatpush1.msra.mxu0 %v395
    %460 = vmatprep.subr.mxu0 0.0
    %461 = vmatpush1.msra.mxu0 %v396
    %462 = vmatprep.subr.mxu0 0.0
    %463 = vmatpush1.msra.mxu0 %v397
    %464 = vmatprep.subr.mxu0 0.0
    %465 = vmatpush1.msra.mxu0 %v398
    %466 = vmatprep.subr.mxu0 0.0
    %467 = vmatpush1.msra.mxu0 %v399
    %468 = vmatprep.subr.mxu0 0.0
    %469 = vmatpush1.msra.mxu0 %v400
    %470 = vmatprep.subr.mxu0 0.0
    %471 = vmatpush1.msra.mxu0 %v401
    %472 = vmatprep.subr.mxu0 0.0
    %473 = vmatpush1.msra.mxu0 %v402
    %474 = vmatprep.mubr.f32.mxu0 %v370
    %475 = vmatmul.mubr.f32.gmra.mrb[0].mxu0 %v369
    %v476 = vpop.f32.mrb[0].mxu0
    %v477 = vadd.f32 %v408, %v476
    %v478 = vpop.f32.mrb[0].mxu0
    %479 = vdwg.mxu0
    %480 = vst [vmem:[#allocation11] sm:$0xff] %v477
    // Predicated region
    $region42: #{tpu_custom_call.1} parent=1 // pred_check
      _
    $region43: #{tpu_custom_call.1} parent=1 // pred_check_branch
      %482 = sbr.rel (0) target = $region45
    $region44: #{tpu_custom_call.1} parent=1 // pred_region
      %s484 = ssub.s32 128, 128
      %485 = vsyncadd [#allocation4], %s484
      %s487 = sshll.u32 [#allocation11], 4
      %s488 = int_to_ptr.vmem [resolvable:$true] %s487
      %490 = dma.vmem_to_hbm [thread:$0]  %s488, 128, %s5, [#allocation4]
    $region45: #{tpu_custom_call.1} parent=1 // pred_fallthru
      _
    // Predicated region
    $region46: #{tpu_custom_call.1} parent=1 // pred_check
      _
    $region47: #{tpu_custom_call.1} parent=1 // pred_check_branch
      %492 = sbr.rel (0) target = $region49
    $region48: #{tpu_custom_call.1} parent=1 // pred_region
      %493 = dma.done [#allocation4], 128
    $region49: #{tpu_custom_call.1} parent=1 // pred_fallthru
      _
    %494 = vsyncpa [#allocation3], 1
    %495 = vsyncpa [#allocation6], 1
    %496 = vsyncpa [#allocation9], 1
    %497 = vsyncpa [#allocation4], 1

</llo_original>
